<compile_context>
chip_gen: v7x
topology: tpu7x:2x2x1
jax: 0.10.0
libtpu: 0.0.40
codegen_flags: <defaults>
</compile_context>

<pallas_src>
import functools

import jax
import jax.numpy as jnp
from jax import lax
from jax.experimental import pallas as pl
from jax.experimental.pallas import tpu as pltpu


# --------------------------------------------------------------------------
# kernels
# --------------------------------------------------------------------------
def _linreg_kernel_bias(x_ref, w_ref, g_ref, b_ref, o_ref, *, mxu_dtype):
    # gate the activations: (tb, I) * (1, I)  -- cheaper than gating (O, I)
    xg = (x_ref[...] * g_ref[...]).astype(mxu_dtype)
    # out = xg @ w.T, expressed as a contraction on axis I of both operands
    # (MXU consumes it directly; no XLU transpose, no gated-weight temporary)
    out = lax.dot_general(
        xg, w_ref[...].astype(mxu_dtype),
        dimension_numbers=(((1,), (1,)), ((), ())),
        preferred_element_type=jnp.float32)
    o_ref[...] = (out + b_ref[...]).astype(o_ref.dtype)


def _linreg_kernel_nobias(x_ref, w_ref, g_ref, o_ref, *, mxu_dtype):
    xg = (x_ref[...] * g_ref[...]).astype(mxu_dtype)
    out = lax.dot_general(
        xg, w_ref[...].astype(mxu_dtype),
        dimension_numbers=(((1,), (1,)), ((), ())),
        preferred_element_type=jnp.float32)
    o_ref[...] = out.astype(o_ref.dtype)


# --------------------------------------------------------------------------
# one-time parameter setup (OUTSIDE the forward path)
# --------------------------------------------------------------------------
def _round_up(n, m):
    return ((n + m - 1) // m) * m


def pad_linear_params(weight, bias=None):
    """Pad static parameters to lane-dense shapes once, at init time.

    weight: (O, I) -> (O_pad, I) with O_pad = round_up(O, 128) (zero rows)
    bias:   (O,)   -> (1, O_pad)                         (zero columns)
    Returns (weight_padded, bias_padded_or_None, O).
    """
    O, I = weight.shape
    O_pad = _round_up(O, 128)
    w_p = weight if O_pad == O else jnp.pad(weight, ((0, O_pad - O), (0, 0)))
    b_p = None
    if bias is not None:
        b_p = bias.reshape(1, O).astype(weight.dtype)
        if O_pad != O:
            b_p = jnp.pad(b_p, ((0, 0), (0, O_pad - O)))
    # TODO(synk): if I is large and not a multiple of 128, pad I here too so
    # the (tb, I)/(tn, I) tiles are lane-dense along the contraction axis.
    return w_p, b_p, O


# --------------------------------------------------------------------------
# forward
# --------------------------------------------------------------------------
def linear_regression_forward(x, weight_padded, term_gates, bias_padded=None,
                              out_features=None, *, block_b=512,
                              mxu_dtype=jnp.bfloat16, use_pallas=None):
    """x: (B, I); weight_padded: (O_pad, I) from pad_linear_params;
    term_gates: (1, I) or (I,); bias_padded: (1, O_pad) or None.
    Returns (B, out_features)."""
    B, I = x.shape
    O_pad, I2 = weight_padded.shape
    assert I == I2
    O = O_pad if out_features is None else out_features
    term_gates = term_gates.reshape(1, I).astype(x.dtype)

    # Tiny problems: one vreg of work -- let XLA fuse it, skip kernel dispatch.
    if use_pallas is None:
        use_pallas = (B * I * O_pad) >= (1 << 18)
    if not use_pallas:
        out = (x * term_gates) @ weight_padded[:O].T
        if bias_padded is not None:
            out = out + bias_padded[0, :O]
        return out

    # ---- tiling -----------------------------------------------------------
    # Batch tile: full B for small batches (block row-dim == full array dim is
    # always legal), otherwise 512-row tiles; ragged last block is masked by
    # Pallas -- no per-call padding of x.
    tb = B if B <= block_b else _round_up(block_b, 8)
    # Output tile: 256 matches the v6e/v7x 2x256 MXU when O_pad allows,
    # else 128 (native on v5e). Keeps the weight block VMEM footprint bounded
    # on v7x (64 MiB) and gives both v7x TensorCores work even at small B.
    tn = 256 if (O_pad % 256 == 0) else 128
    grid = (pl.cdiv(B, tb), O_pad // tn)

    # Explicit VMEM budget: double-buffered x/w/gates/bias/out tiles + margin,
    # capped at v7x physical VMEM.
    itemsize = 4
    tile_bytes = (tb * I + tn * I + I + tn + tb * tn) * itemsize
    vmem_limit = int(min(max(4 * tile_bytes, 16 << 20), 64 << 20))

    cparams = pltpu.CompilerParams(
        dimension_semantics=("parallel", "parallel"),
        vmem_limit_bytes=vmem_limit)

    x_spec = pl.BlockSpec((tb, I), lambda i, j: (i, 0))
    w_spec = pl.BlockSpec((tn, I), lambda i, j: (j, 0))
    g_spec = pl.BlockSpec((1, I), lambda i, j: (0, 0))
    o_spec = pl.BlockSpec((tb, tn), lambda i, j: (i, j))
    out_shape = jax.ShapeDtypeStruct((B, O_pad), x.dtype)

    if bias_padded is not None:
        b_spec = pl.BlockSpec((1, tn), lambda i, j: (0, j))
        out = pl.pallas_call(
            functools.partial(_linreg_kernel_bias, mxu_dtype=mxu_dtype),
            out_shape=out_shape,
            grid=grid,
            in_specs=[x_spec, w_spec, g_spec, b_spec],
            out_specs=o_spec,
            compiler_params=cparams,
        )(x, weight_padded, term_gates, bias_padded)
    else:
        out = pl.pallas_call(
            functools.partial(_linreg_kernel_nobias, mxu_dtype=mxu_dtype),
            out_shape=out_shape,
            grid=grid,
            in_specs=[x_spec, w_spec, g_spec],
            out_specs=o_spec,
            compiler_params=cparams,
        )(x, weight_padded, term_gates)

    # Batch was never padded; only drop the padded output columns (if any).
    # Callers that can consume a lane-dense (B, O_pad) output should pass
    # out_features=None and skip this copy entirely.
    return out if O == O_pad else out[:, :O]


# --------------------------------------------------------------------------
# demo / self-test
# --------------------------------------------------------------------------
if __name__ == "__main__":
    key = jax.random.PRNGKey(0)
    k_x, k_w, k_g = jax.random.split(key, 3)

    B, inputSize, outputSize = 8, 32, 16
    linear_bias = True

    # parameter init matching torch.Tensor(O, I).uniform_(-1, 1)
    weight = jax.random.uniform(k_w, (outputSize, inputSize),
                                dtype=jnp.float32, minval=-1.0, maxval=1.0)
    bias = jnp.zeros((outputSize,), dtype=jnp.float32) if linear_bias else None

    # example inputs
    x = jax.random.normal(k_x, (B, inputSize), dtype=jnp.float32)
    term_gates = (jax.random.uniform(k_g, (1, inputSize), dtype=jnp.float32)
                  > 0.5).astype(jnp.float32)

    # one-time parameter padding (outside the forward path)
    w_pad, b_pad, O = pad_linear_params(weight, bias)

    # pure-JAX reference (gated weight; the normalization loop is a no-op)
    w_eff = weight * term_gates
    ref = x @ w_eff.T + (bias if bias is not None else 0.0)

    # Pallas kernel, default bf16 MXU operands (relaxed tolerance)
    out_bf16 = linear_regression_forward(x, w_pad, term_gates, b_pad,
                                         out_features=O, use_pallas=True)
    out_bf16 = jax.block_until_ready(out_bf16)
    assert out_bf16.shape == (B, outputSize)
    assert jnp.allclose(out_bf16, ref, atol=1e-1, rtol=5e-2), "bf16 mismatch"

    # Pallas kernel, f32 MXU operands (tight tolerance)
    out_f32 = linear_regression_forward(x, w_pad, term_gates, b_pad,
                                        out_features=O,
                                        mxu_dtype=jnp.float32,
                                        use_pallas=True)
    out_f32 = jax.block_until_ready(out_f32)
    assert jnp.allclose(out_f32, ref, atol=1e-5, rtol=1e-5), "f32 mismatch"

    # auto-dispatch path (this size falls back to fused plain XLA)
    out_auto = jax.block_until_ready(
        linear_regression_forward(x, w_pad, term_gates, b_pad, out_features=O))
    assert jnp.allclose(out_auto, ref, atol=1e-5, rtol=1e-5), "auto mismatch"

    print("KERNEL_OK")
</pallas_src>

<mosaic_0001>
module attributes {stable_mosaic.version = 11 : i64} {
  func.func @_linreg_kernel_bias(%arg0: i32, %arg1: i32, %arg2: memref<8x32xf32, #tpu.memory_space<vmem>>, %arg3: memref<128x32xf32, #tpu.memory_space<vmem>>, %arg4: memref<1x32xf32, #tpu.memory_space<vmem>>, %arg5: memref<1x128xf32, #tpu.memory_space<vmem>>, %arg6: memref<8x128xf32, #tpu.memory_space<vmem>>) attributes {dimension_semantics = [#tpu.dimension_semantics<parallel>, #tpu.dimension_semantics<parallel>], iteration_bounds = array<i64: 1, 1>, scalar_prefetch = 0 : i64, scratch_operands = 0 : i64, tpu.core_type = #tpu.core_type<tc>, window_params = [{transform_indices = @transform_0, window_bounds = array<i64: 8, 32>}, {transform_indices = @transform_1, window_bounds = array<i64: 128, 32>}, {pipeline_mode = #tpu.pipeline_mode<synchronous>, transform_indices = @transform_2, window_bounds = array<i64: 1, 32>}, {transform_indices = @transform_3, window_bounds = array<i64: 1, 128>}, {transform_indices = @transform_4, window_bounds = array<i64: 8, 128>}]} {
    %c0 = arith.constant 0 : index
    %c0_0 = arith.constant 0 : index
    %0 = vector.load %arg2[%c0, %c0_0] : memref<8x32xf32, #tpu.memory_space<vmem>>, vector<8x32xf32>
    %c0_1 = arith.constant 0 : index
    %c0_2 = arith.constant 0 : index
    %1 = vector.load %arg4[%c0_1, %c0_2] : memref<1x32xf32, #tpu.memory_space<vmem>>, vector<1x32xf32>
    %2 = vector.broadcast %1 : vector<1x32xf32> to vector<8x32xf32>
    %3 = arith.mulf %0, %2 : vector<8x32xf32>
    %4 = arith.truncf %3 : vector<8x32xf32> to vector<8x32xbf16>
    %c0_3 = arith.constant 0 : index
    %c0_4 = arith.constant 0 : index
    %5 = vector.load %arg3[%c0_3, %c0_4] : memref<128x32xf32, #tpu.memory_space<vmem>>, vector<128x32xf32>
    %6 = arith.truncf %5 : vector<128x32xf32> to vector<128x32xbf16>
    %cst = arith.constant dense<0.000000e+00> : vector<8x128xf32>
    %7 = tpu.matmul %4, %6, %cst {dimension_numbers = #tpu.dot_dimension_numbers<[1], [1], [0], [0], [0, 0, 1, 0], [], []>} : vector<8x32xbf16>, vector<128x32xbf16>, vector<8x128xf32> -> vector<8x128xf32>
    %c0_5 = arith.constant 0 : index
    %c0_6 = arith.constant 0 : index
    %8 = vector.load %arg5[%c0_5, %c0_6] : memref<1x128xf32, #tpu.memory_space<vmem>>, vector<1x128xf32>
    %9 = vector.broadcast %8 : vector<1x128xf32> to vector<8x128xf32>
    %10 = arith.addf %7, %9 : vector<8x128xf32>
    %c0_7 = arith.constant 0 : index
    %c0_8 = arith.constant 0 : index
    %11 = vector.load %arg6[%c0_7, %c0_8] : memref<8x128xf32, #tpu.memory_space<vmem>>, vector<8x128xf32>
    tpu.vector_store %arg6[%c0_7, %c0_8], %10 {strides = array<i32>} : memref<8x128xf32, #tpu.memory_space<vmem>>, vector<8x128xf32>,
    return
  }
  func.func @transform_0(%arg0: i32, %arg1: i32) -> (i32, i32) {
    %c0_i32 = arith.constant 0 : i32
    %c0_i32_0 = arith.constant 0 : i32
    return %arg0, %c0_i32 : i32, i32
  }
  func.func @transform_1(%arg0: i32, %arg1: i32) -> (i32, i32) {
    %c0_i32 = arith.constant 0 : i32
    %c0_i32_0 = arith.constant 0 : i32
    return %arg1, %c0_i32 : i32, i32
  }
  func.func @transform_2(%arg0: i32, %arg1: i32) -> (i32, i32) {
    %c0_i32 = arith.constant 0 : i32
    %c0_i32_0 = arith.constant 0 : i32
    %c0_i32_1 = arith.constant 0 : i32
    return %c0_i32, %c0_i32_0 : i32, i32
  }
  func.func @transform_3(%arg0: i32, %arg1: i32) -> (i32, i32) {
    %c0_i32 = arith.constant 0 : i32
    %c0_i32_0 = arith.constant 0 : i32
    return %c0_i32, %arg1 : i32, i32
  }
  func.func @transform_4(%arg0: i32, %arg1: i32) -> (i32, i32) {
    %c0_i32 = arith.constant 0 : i32
    return %arg0, %arg1 : i32, i32
  }
}

</mosaic_0001>

<llo_original>
// kernel: tpu_custom_call.1
$region0: #{tpu_custom_call.1}
  #allocation0 [shape = 'u32[]', space=smem, size = 0x4, offset = 0x4, fixed_abs, tag = 'smem constant byte address 0x4 - core index']
  #allocation1 [shape = 'u32[144,128]{1,0:T(1,128)}', space=vmem, size = 0x12000, scoped, tag = 'internal scratch']
  %s0 = inlined_call_operand.vmem [shape: f32[8,32], index: 0, kind: input, shape index: {}]
  %s1 = inlined_call_operand.vmem [shape: f32[128,32], index: 1, kind: input, shape index: {}]
  %s2 = inlined_call_operand.vmem [shape: f32[1,32], index: 2, kind: input, shape index: {}]
  %s3 = inlined_call_operand.vmem [shape: f32[1,128], index: 3, kind: input, shape index: {}]
  %s4 = inlined_call_operand.hbm [shape: f32[8,128], index: 4, kind: output, shape index: {}]
  %s5 = sld [smem:[#allocation0]]
  $region26: #{tpu_custom_call.1} parent=0
    _
  %s7 = ssub.s32 1, %s5
  %s8 = scalar_select 0, %s7, %s5
  $region1: #{tpu_custom_call.1} parent=0
    #allocation2 [shape = 'u8[4096]{0}', space=vmem, size = 0x1000, scoped, tag = 'output window, operand 0, single buffered']
    #allocation3 [shape = 's32[1]{0}', space=sflag, size = 0x4, scoped, tag = 'scoped memory for tpu_custom_call.1']
    %9 = vsyncpa [#allocation3], 0
    // Predicated region
    $region2: #{tpu_custom_call.1} parent=1 // pred_check
      _
    $region3: #{tpu_custom_call.1} parent=1 // pred_check_branch
      %11 = sbr.rel (0) target = $region5
    $region4: #{tpu_custom_call.1} parent=1 // pred_region
      _
    $region5: #{tpu_custom_call.1} parent=1 // pred_fallthru
      _
    // Predicated region
    $region6: #{tpu_custom_call.1} parent=1 // pred_check
      _
    $region7: #{tpu_custom_call.1} parent=1 // pred_check_branch
      %13 = sbr.rel (0) target = $region9
    $region8: #{tpu_custom_call.1} parent=1 // pred_region
      _
    $region9: #{tpu_custom_call.1} parent=1 // pred_fallthru
      _
    // Predicated region
    $region10: #{tpu_custom_call.1} parent=1 // pred_check
      _
    $region11: #{tpu_custom_call.1} parent=1 // pred_check_branch
      %15 = sbr.rel (0) target = $region13
    $region12: #{tpu_custom_call.1} parent=1 // pred_region
      _
    $region13: #{tpu_custom_call.1} parent=1 // pred_fallthru
      _
    // Predicated region
    $region14: #{tpu_custom_call.1} parent=1 // pred_check
      _
    $region15: #{tpu_custom_call.1} parent=1 // pred_check_branch
      %17 = sbr.rel (0) target = $region17
    $region16: #{tpu_custom_call.1} parent=1 // pred_region
      _
    $region17: #{tpu_custom_call.1} parent=1 // pred_fallthru
      _
    %v19 = vld [vmem:[%s0] sm:$0xff]
    %v20 = vld [vmem:[%s2] sm:$0x1]
    %v22 = vlaneseq
    %v23 = vshrl.u32 %v22, 7
    %v24 = vsub.s32 0, %v23
    %v25 = vrot.slane %v20, %v24
    %v27 = vmul.f32 %v19, %v25
    %v28 = vpack.c.bf16 %v27, %v27
    %v29 = vld [vmem:[%s1] sm:$0xff]
    %v30 = vld [vmem:[%s1 + $0x8] sm:$0xff]
    %v31 = vld [vmem:[%s1 + $0x10] sm:$0xff]
    %v32 = vld [vmem:[%s1 + $0x18] sm:$0xff]
    %v33 = vld [vmem:[%s1 + $0x20] sm:$0xff]
    %v34 = vld [vmem:[%s1 + $0x28] sm:$0xff]
    %v35 = vld [vmem:[%s1 + $0x30] sm:$0xff]
    %v36 = vld [vmem:[%s1 + $0x38] sm:$0xff]
    %v37 = vld [vmem:[%s1 + $0x40] sm:$0xff]
    %v38 = vld [vmem:[%s1 + $0x48] sm:$0xff]
    %v39 = vld [vmem:[%s1 + $0x50] sm:$0xff]
    %v40 = vld [vmem:[%s1 + $0x58] sm:$0xff]
    %v41 = vld [vmem:[%s1 + $0x60] sm:$0xff]
    %v42 = vld [vmem:[%s1 + $0x68] sm:$0xff]
    %v43 = vld [vmem:[%s1 + $0x70] sm:$0xff]
    %v44 = vld [vmem:[%s1 + $0x78] sm:$0xff]
    %v45 = vpack.c.bf16 %v30, %v29
    %v46 = vpack.c.bf16 %v32, %v31
    %v47 = vpack.c.bf16 %v34, %v33
    %v48 = vpack.c.bf16 %v36, %v35
    %v49 = vpack.c.bf16 %v38, %v37
    %v50 = vpack.c.bf16 %v40, %v39
    %v51 = vpack.c.bf16 %v42, %v41
    %v52 = vpack.c.bf16 %v44, %v43
    %v53 = vld [vmem:[%s3] sm:$0x1]
    %v55 = vlaneseq
    %v56 = vshrl.u32 %v55, 7
    %v57 = vsub.s32 0, %v56
    %v58 = vrot.slane %v53, %v57
    %vm60 = vcmask 261120
    %v62 = vsel %vm60, %v28, 0
    %v65 = vsel %vm60, %v45, 0
    %v68 = vsel %vm60, %v46, 0
    %v71 = vsel %vm60, %v47, 0
    %v74 = vsel %vm60, %v48, 0
    %v77 = vsel %vm60, %v49, 0
    %v80 = vsel %vm60, %v50, 0
    %v83 = vsel %vm60, %v51, 0
    %v86 = vsel %vm60, %v52, 0
    %88 = vmatprep.subr.bf16.mxu0 0
    %89 = vmatpush1.bf16.xpose.msra.mxu0 %v65
    %90 = vmatprep.subr.bf16.mxu0 0
    %91 = vmatpush1.bf16.xpose.msra.mxu0 %v68
    %92 = vmatprep.subr.bf16.mxu0 0
    %93 = vmatpush1.bf16.xpose.msra.mxu0 %v71
    %94 = vmatprep.subr.bf16.mxu0 0
    %95 = vmatpush1.bf16.xpose.msra.mxu0 %v74
    %96 = vmatprep.subr.bf16.mxu0 0
    %97 = vmatpush1.bf16.xpose.msra.mxu0 %v77
    %98 = vmatprep.subr.bf16.mxu0 0
    %99 = vmatpush1.bf16.xpose.msra.mxu0 %v80
    %100 = vmatprep.subr.bf16.mxu0 0
    %101 = vmatpush1.bf16.xpose.msra.mxu0 %v83
    %102 = vmatprep.subr.bf16.mxu0 0
    %103 = vmatpush1.bf16.xpose.msra.mxu0 %v86
    %104 = vmatprep.subr.bf16.mxu0 0
    %105 = vmatpush1.bf16.xpose.msra.mxu0 0
    %106 = vmatprep.subr.bf16.mxu0 0
    %107 = vmatpush1.bf16.xpose.msra.mxu0 0
    %108 = vmatprep.subr.bf16.mxu0 0
    %109 = vmatpush1.bf16.xpose.msra.mxu0 0
    %110 = vmatprep.subr.bf16.mxu0 0
    %111 = vmatpush1.bf16.xpose.msra.mxu0 0
    %112 = vmatprep.subr.bf16.mxu0 0
    %113 = vmatpush1.bf16.xpose.msra.mxu0 0
    %114 = vmatprep.subr.bf16.mxu0 0
    %115 = vmatpush1.bf16.xpose.msra.mxu0 0
    %116 = vmatprep.subr.bf16.mxu0 0
    %117 = vmatpush1.bf16.xpose.msra.mxu0 0
    %118 = vmatprep.subr.bf16.mxu0 0
    %119 = vmatpush1.bf16.xpose.msra.mxu0 0
    %120 = vmatprep.mubr.bf16.mxu0 0
    %121 = vmatmul.mubr.bf16.gmra.mrb[0].mxu0 %v62
    %v122 = vpop.f32.mrb[0].mxu0
    %v123 = vadd.f32 %v58, %v122
    %v124 = vpop.f32.mrb[0].mxu0
    %v125 = vpop.f32.mrb[0].mxu0
    %v126 = vpop.f32.mrb[0].mxu0
    %127 = vdwg.mxu0
    %128 = vst [vmem:[#allocation2] sm:$0xff] %v123
    // Predicated region
    $region18: #{tpu_custom_call.1} parent=1 // pred_check
      _
    $region19: #{tpu_custom_call.1} parent=1 // pred_check_branch
      %130 = sbr.rel (0) target = $region21
    $region20: #{tpu_custom_call.1} parent=1 // pred_region
      %s132 = ssub.s32 128, 128
      %133 = vsyncadd [#allocation3], %s132
      %s135 = sshll.u32 [#allocation2], 4
      %s136 = int_to_ptr.vmem [resolvable:$true] %s135
      %138 = dma.vmem_to_hbm [thread:$0]  %s136, 128, %s4, [#allocation3]
    $region21: #{tpu_custom_call.1} parent=1 // pred_fallthru
      _
    // Predicated region
    $region22: #{tpu_custom_call.1} parent=1 // pred_check
      _
    $region23: #{tpu_custom_call.1} parent=1 // pred_check_branch
      %140 = sbr.rel (0) target = $region25
    $region24: #{tpu_custom_call.1} parent=1 // pred_region
      %141 = dma.done [#allocation3], 128
    $region25: #{tpu_custom_call.1} parent=1 // pred_fallthru
      _
    %142 = vsyncpa [#allocation3], 1

</llo_original>
